<compile_context>
chip_gen: v5e
topology: v5e:2x2
jax: 0.10.0
libtpu: 0.0.40
codegen_flags: <defaults>
</compile_context>

<pallas_src>
import functools
import math

import jax
import jax.numpy as jnp
from jax.experimental import pallas as pl
from jax.experimental.pallas import tpu as pltpu


def _ceil_div(a: int, b: int) -> int:
    return -(-a // b)


def _round_up(a: int, m: int) -> int:
    return _ceil_div(a, m) * m


def _round_down(a: int, m: int) -> int:
    return (a // m) * m


# ---------------------------------------------------------------------------
# Kernel body
# ---------------------------------------------------------------------------
def _overarch_kernel(dense_ref, sparse_ref, w_ref, b_ref, o_ref, *, d_dense: int):
    # out = dense @ W[:d_dense] + sparse @ W[d_dense:] + b
    # d_dense is asserted sublane-aligned in the wrapper, so both static weight
    # slices are free (no relayout).
    # NOTE: on the ragged tail block, the padded rows of dense/sparse hold
    # garbage; the resulting garbage output rows are masked on the store, so
    # this is numerically benign.  Do NOT add row-wise reductions here.
    acc = jnp.dot(dense_ref[...], w_ref[:d_dense, :],
                  preferred_element_type=jnp.float32)
    acc = acc + jnp.dot(sparse_ref[...], w_ref[d_dense:, :],
                        preferred_element_type=jnp.float32)
    o_ref[...] = (acc + b_ref[...]).astype(o_ref.dtype)


# ---------------------------------------------------------------------------
# Batch-tile derivation (HBM-payload + lane-padded-VMEM driven)
# ---------------------------------------------------------------------------
_TARGET_STEP_BYTES = 4 << 20    # ~4 MiB raw HBM payload per grid step
_MIN_STEP_BYTES = 3 << 19       # ~1.5 MiB floor: below this the ~0.35us/step cost dominates
_VMEM_BLOCK_BUDGET = 24 << 20   # double-buffered, lane-padded blocks; safe on v7x's 64 MiB
_VMEM_LIMIT_BYTES = 64 << 20    # scoped-VMEM limit handed to Mosaic (>= defaults on all gens)


def _derive_batch_tile(B: int, d_dense: int, d_sparse: int, d_out: int,
                       itemsize: int, row_align: int) -> int:
    """Pick the batch tile tb for the grid over B rows."""
    lane_pad = lambda d: _round_up(d, 128)
    # Raw HBM bytes actually moved per row (dense + sparse reads, output write).
    raw_row = (d_dense + d_sparse + d_out) * itemsize
    # Lane-padded VMEM bytes per row per buffer: e.g. f32 8->128, 160->256, 16->128.
    vmem_row = (lane_pad(d_dense) + lane_pad(d_sparse) + lane_pad(d_out)) * itemsize

    # Tile upper bound: payload target and double-buffered VMEM budget.
    tb_cap = min(_TARGET_STEP_BYTES // raw_row,
                 _VMEM_BLOCK_BUDGET // (2 * vmem_row))
    tb_cap = max(row_align, _round_down(tb_cap, row_align))

    # Number of grid steps: enough to cover B with tb_cap, but prefer >=4 steps
    # (>=2 per TensorCore on v7x) while each step still moves >= _MIN_STEP_BYTES.
    max_useful_steps = max(1, (B * raw_row) // _MIN_STEP_BYTES)
    n_steps = max(_ceil_div(B, tb_cap), min(4, max_useful_steps))
    if n_steps <= 1:
        # Single full block: block_shape == full array dims, so the (8,128)
        # divisibility constraint does not apply.
        return B

    tb = _round_up(_ceil_div(B, n_steps), row_align)  # even split, sublane-aligned
    return min(tb, tb_cap)


# ---------------------------------------------------------------------------
# Wrapper
# ---------------------------------------------------------------------------
def sequence_over_arch(dense: jax.Array,
                       sparse: jax.Array,
                       weight: jax.Array,
                       bias: jax.Array,
                       *,
                       block_b: int | None = None) -> jax.Array:
    """TestSequenceOverArch.forward == Linear(cat([dense, sparse], dim=1)).

    weight: (in_features, 16)  (transpose of PyTorch's (16, in_features))
    bias:   (16,)
    block_b: optional manual batch-tile override (testing / sweeps); when None
             the tile is derived from HBM-payload and VMEM-footprint targets.
    """
    B, d_dense = dense.shape
    _, d_sparse = sparse.shape
    in_features = d_dense + d_sparse
    assert weight.shape[0] == in_features
    out_features = weight.shape[1]
    assert bias.shape == (out_features,)
    assert dense.dtype == sparse.dtype == weight.dtype == bias.dtype

    itemsize = jnp.dtype(dense.dtype).itemsize
    # Sublane packing: f32 -> 8 rows, bf16 -> 16, int8/fp8 -> 32.
    row_align = max(8, 32 // itemsize)
    # The in-kernel weight slice at row d_dense and the batch-tile rounding both
    # require d_dense to be sublane-aligned for this dtype (true for f32 / d=8).
    assert d_dense % row_align == 0, (
        f"d_dense={d_dense} must be a multiple of {row_align} for dtype "
        f"{dense.dtype}; pad dense or use float32.")

    if block_b is None:
        tb = _derive_batch_tile(B, d_dense, d_sparse, out_features,
                                itemsize, row_align)
    else:
        tb = min(B, max(row_align, _round_down(block_b, row_align)))
    grid = (pl.cdiv(B, tb),)

    bias2d = bias.reshape(1, out_features)

    cost = pl.CostEstimate(
        flops=2 * B * in_features * out_features,
        transcendentals=0,
        bytes_accessed=(B * in_features                 # activations read
                        + in_features * out_features    # weight read
                        + out_features                  # bias read
                        + B * out_features) * itemsize,  # output write
    )

    kernel = functools.partial(_overarch_kernel, d_dense=d_dense)

    return pl.pallas_call(
        kernel,
        out_shape=jax.ShapeDtypeStruct((B, out_features), dense.dtype),
        grid=grid,
        in_specs=[
            pl.BlockSpec((tb, d_dense), lambda i: (i, 0)),
            # Dominant (HBM-bound) DMA stream.
            pl.BlockSpec((tb, d_sparse), lambda i: (i, 0)),
            # Full weight / bias with constant index maps -> stay VMEM-resident
            # across all batch-grid steps (no re-DMA).
            pl.BlockSpec((in_features, out_features), lambda i: (0, 0)),
            pl.BlockSpec((1, out_features), lambda i: (0, 0)),
        ],
        out_specs=pl.BlockSpec((tb, out_features), lambda i: (i, 0)),
        compiler_params=pltpu.CompilerParams(
            # Batch steps are independent -> shard across both TCs on v7x.
            dimension_semantics=("parallel",),
            # Above the scoped defaults (16 MiB v5e / 32 MiB v6e, v7x) so the
            # larger double-buffered tiles are not rejected or shrunk; actual
            # usage stays ~<25 MiB, well under v7x's 64 MiB physical VMEM.
            vmem_limit_bytes=_VMEM_LIMIT_BYTES,
        ),
        cost_estimate=cost,
    )(dense, sparse, weight, bias2d)


# ---------------------------------------------------------------------------
# Self-test
# ---------------------------------------------------------------------------
if __name__ == "__main__":
    # Pure-Python sanity checks of the tile derivation (no TPU work needed).
    # in_features ~ 168, f32: raw ~736 B/row, lane-padded VMEM ~2 KiB/row/buffer.
    tb_big = _derive_batch_tile(100_000, 8, 160, 16, 4, 8)
    assert tb_big % 8 == 0 and 2048 <= tb_big <= 8192, tb_big
    assert 2 * tb_big * (128 + 256 + 128) * 4 <= _VMEM_BLOCK_BUDGET
    tb_mid = _derive_batch_tile(10_000, 8, 160, 16, 4, 8)
    assert tb_mid % 8 == 0 and _ceil_div(10_000, tb_mid) >= 4, tb_mid
    assert _derive_batch_tile(64, 8, 160, 16, 4, 8) == 64  # small B -> 1 block

    # Synthetic table configs: 2 tables, embedding_dim=4, 1 feature each.
    # in_features = 8 + (4 * 1 * 20) + (4 * 1 * 20) = 168
    table_dims = [(4, 1), (4, 1)]  # (embedding_dim, num_feature_names)
    dense_dim = 8
    sparse_dim = sum(d * n * 20 for d, n in table_dims)
    in_features = dense_dim + sparse_dim
    out_features = 16
    batch = 64

    key = jax.random.PRNGKey(0)
    k_dense, k_sparse, k_w, k_b = jax.random.split(key, 4)

    dense = jax.random.normal(k_dense, (batch, dense_dim), dtype=jnp.float32)
    sparse = jax.random.normal(k_sparse, (batch, sparse_dim), dtype=jnp.float32)

    # Deterministic nn.Linear-style init: U(-1/sqrt(in), 1/sqrt(in)).
    bound = 1.0 / math.sqrt(in_features)
    weight = jax.random.uniform(k_w, (in_features, out_features),
                                minval=-bound, maxval=bound, dtype=jnp.float32)
    bias = jax.random.uniform(k_b, (out_features,),
                              minval=-bound, maxval=bound, dtype=jnp.float32)

    # Reference in plain JAX (same math as torch: linear(cat(...))).
    ref = jnp.concatenate([dense, sparse], axis=1) @ weight + bias

    # Path 1: derived tile -> single full block for this small batch.
    out1 = jax.block_until_ready(sequence_over_arch(dense, sparse, weight, bias))
    assert out1.shape == (batch, out_features)
    assert jnp.allclose(out1, ref, atol=1e-5, rtol=1e-5)

    # Path 2: multi-step batch grid (exercises pipelining + resident weights).
    out2 = jax.block_until_ready(
        sequence_over_arch(dense, sparse, weight, bias, block_b=16))
    assert jnp.allclose(out2, ref, atol=1e-5, rtol=1e-5)

    # Path 3: ragged tail block (64 = 24 + 24 + 16) -> masked tail store.
    out3 = jax.block_until_ready(
        sequence_over_arch(dense, sparse, weight, bias, block_b=24))
    assert jnp.allclose(out3, ref, atol=1e-5, rtol=1e-5)

    print("KERNEL_OK")
</pallas_src>

<mosaic_0001>
module attributes {stable_mosaic.version = 11 : i64} {
  func.func @_overarch_kernel(%arg0: i32, %arg1: memref<64x8xf32, #tpu.memory_space<vmem>>, %arg2: memref<64x160xf32, #tpu.memory_space<vmem>>, %arg3: memref<168x16xf32, #tpu.memory_space<vmem>>, %arg4: memref<1x16xf32, #tpu.memory_space<vmem>>, %arg5: memref<64x16xf32, #tpu.memory_space<vmem>>) attributes {dimension_semantics = [#tpu.dimension_semantics<parallel>], iteration_bounds = array<i64: 1>, scalar_prefetch = 0 : i64, scratch_operands = 0 : i64, tpu.core_type = #tpu.core_type<tc>, window_params = [{transform_indices = @transform_0, window_bounds = array<i64: 64, 8>}, {transform_indices = @transform_1, window_bounds = array<i64: 64, 160>}, {pipeline_mode = #tpu.pipeline_mode<synchronous>, transform_indices = @transform_2, window_bounds = array<i64: 168, 16>}, {pipeline_mode = #tpu.pipeline_mode<synchronous>, transform_indices = @transform_3, window_bounds = array<i64: 1, 16>}, {transform_indices = @transform_4, window_bounds = array<i64: 64, 16>}]} {
    %c0 = arith.constant 0 : index
    %c0_0 = arith.constant 0 : index
    %0 = vector.load %arg1[%c0, %c0_0] : memref<64x8xf32, #tpu.memory_space<vmem>>, vector<64x8xf32>
    %c0_1 = arith.constant 0 : index
    %c0_2 = arith.constant 0 : index
    %1 = vector.load %arg3[%c0_1, %c0_2] : memref<168x16xf32, #tpu.memory_space<vmem>>, vector<8x16xf32>
    %cst = arith.constant dense<0.000000e+00> : vector<64x16xf32>
    %2 = tpu.matmul %0, %1, %cst {dimension_numbers = #tpu.dot_dimension_numbers<[1], [0], [0], [1], [0, 0, 1, 1], [], []>} : vector<64x8xf32>, vector<8x16xf32>, vector<64x16xf32> -> vector<64x16xf32>
    %c0_3 = arith.constant 0 : index
    %c0_4 = arith.constant 0 : index
    %3 = vector.load %arg2[%c0_3, %c0_4] : memref<64x160xf32, #tpu.memory_space<vmem>>, vector<64x160xf32>
    %c8 = arith.constant 8 : index
    %c0_5 = arith.constant 0 : index
    %4 = vector.load %arg3[%c8, %c0_5] : memref<168x16xf32, #tpu.memory_space<vmem>>, vector<160x16xf32>
    %cst_6 = arith.constant dense<0.000000e+00> : vector<64x16xf32>
    %5 = tpu.matmul %3, %4, %cst_6 {dimension_numbers = #tpu.dot_dimension_numbers<[1], [0], [0], [1], [0, 0, 1, 1], [], []>} : vector<64x160xf32>, vector<160x16xf32>, vector<64x16xf32> -> vector<64x16xf32>
    %6 = arith.addf %2, %5 : vector<64x16xf32>
    %c0_7 = arith.constant 0 : index
    %c0_8 = arith.constant 0 : index
    %7 = vector.load %arg4[%c0_7, %c0_8] : memref<1x16xf32, #tpu.memory_space<vmem>>, vector<1x16xf32>
    %8 = vector.broadcast %7 : vector<1x16xf32> to vector<64x16xf32>
    %9 = arith.addf %6, %8 : vector<64x16xf32>
    %c0_9 = arith.constant 0 : index
    %c0_10 = arith.constant 0 : index
    %10 = vector.load %arg5[%c0_9, %c0_10] : memref<64x16xf32, #tpu.memory_space<vmem>>, vector<64x16xf32>
    tpu.vector_store %arg5[%c0_9, %c0_10], %9 {strides = array<i32>} : memref<64x16xf32, #tpu.memory_space<vmem>>, vector<64x16xf32>,
    return
  }
  func.func @transform_0(%arg0: i32) -> (i32, i32) {
    %c0_i32 = arith.constant 0 : i32
    %c0_i32_0 = arith.constant 0 : i32
    return %arg0, %c0_i32 : i32, i32
  }
  func.func @transform_1(%arg0: i32) -> (i32, i32) {
    %c0_i32 = arith.constant 0 : i32
    %c0_i32_0 = arith.constant 0 : i32
    return %arg0, %c0_i32 : i32, i32
  }
  func.func @transform_2(%arg0: i32) -> (i32, i32) {
    %c0_i32 = arith.constant 0 : i32
    %c0_i32_0 = arith.constant 0 : i32
    %c0_i32_1 = arith.constant 0 : i32
    return %c0_i32, %c0_i32_0 : i32, i32
  }
  func.func @transform_3(%arg0: i32) -> (i32, i32) {
    %c0_i32 = arith.constant 0 : i32
    %c0_i32_0 = arith.constant 0 : i32
    %c0_i32_1 = arith.constant 0 : i32
    return %c0_i32, %c0_i32_0 : i32, i32
  }
  func.func @transform_4(%arg0: i32) -> (i32, i32) {
    %c0_i32 = arith.constant 0 : i32
    %c0_i32_0 = arith.constant 0 : i32
    return %arg0, %c0_i32 : i32, i32
  }
}

</mosaic_0001>

<llo_original>
// kernel: tpu_custom_call.1
$region0: #{tpu_custom_call.1}
  #allocation0 [shape = 'u32[]', space=smem, size = 0x4, offset = 0x4, fixed_abs, tag = 'smem constant byte address 0x4 - core index']
  #allocation1 [shape = 'u32[72,128]{1,0:T(1,128)}', space=vmem, size = 0x9000, scoped, tag = 'internal scratch']
  %s0 = inlined_call_operand.vmem [shape: f32[64,8], index: 0, kind: input, shape index: {}]
  %s1 = inlined_call_operand.vmem [shape: f32[64,160], index: 1, kind: input, shape index: {}]
  %s2 = inlined_call_operand.vmem [shape: f32[168,16], index: 2, kind: input, shape index: {}]
  %s3 = inlined_call_operand.vmem [shape: f32[1,16], index: 3, kind: input, shape index: {}]
  %s4 = inlined_call_operand.vmem [shape: f32[64,16], index: 4, kind: output, shape index: {}]
  %s5 = sld [smem:[#allocation0]]
  $region26: #{tpu_custom_call.1} parent=0
    _
  %s7 = ssub.s32 1, %s5
  %s8 = scalar_select 0, %s7, %s5
  // Predicated region
  $region2: #{tpu_custom_call.1} parent=0 // pred_check
    _
  $region3: #{tpu_custom_call.1} parent=0 // pred_check_branch
    %10 = sbr.rel (0) target = $region5
  $region4: #{tpu_custom_call.1} parent=0 // pred_region
    _
  $region5: #{tpu_custom_call.1} parent=0 // pred_fallthru
    _
  // Predicated region
  $region6: #{tpu_custom_call.1} parent=0 // pred_check
    _
  $region7: #{tpu_custom_call.1} parent=0 // pred_check_branch
    %12 = sbr.rel (0) target = $region9
  $region8: #{tpu_custom_call.1} parent=0 // pred_region
    _
  $region9: #{tpu_custom_call.1} parent=0 // pred_fallthru
    _
  // Predicated region
  $region10: #{tpu_custom_call.1} parent=0 // pred_check
    _
  $region11: #{tpu_custom_call.1} parent=0 // pred_check_branch
    %14 = sbr.rel (0) target = $region13
  $region12: #{tpu_custom_call.1} parent=0 // pred_region
    _
  $region13: #{tpu_custom_call.1} parent=0 // pred_fallthru
    _
  // Predicated region
  $region14: #{tpu_custom_call.1} parent=0 // pred_check
    _
  $region15: #{tpu_custom_call.1} parent=0 // pred_check_branch
    %16 = sbr.rel (0) target = $region17
  $region16: #{tpu_custom_call.1} parent=0 // pred_region
    _
  $region17: #{tpu_custom_call.1} parent=0 // pred_fallthru
    _
  %v17 = vld [vmem:[%s0] sm:$0xff]
  %v18 = vld [vmem:[%s0 + $0x8] sm:$0xff]
  %v19 = vld [vmem:[%s0 + $0x10] sm:$0xff]
  %v20 = vld [vmem:[%s0 + $0x18] sm:$0xff]
  %v21 = vld [vmem:[%s0 + $0x20] sm:$0xff]
  %v22 = vld [vmem:[%s0 + $0x28] sm:$0xff]
  %v23 = vld [vmem:[%s0 + $0x30] sm:$0xff]
  %v24 = vld [vmem:[%s0 + $0x38] sm:$0xff]
  %v25 = vld [vmem:[%s2] sm:$0xff]
  %v26 = vld [vmem:[%s1] sm:$0xff]
  %v27 = vld [vmem:[%s1 + $0x8] sm:$0xff]
  %v28 = vld [vmem:[%s1 + $0x10] sm:$0xff]
  %v29 = vld [vmem:[%s1 + $0x18] sm:$0xff]
  %v30 = vld [vmem:[%s1 + $0x20] sm:$0xff]
  %v31 = vld [vmem:[%s1 + $0x28] sm:$0xff]
  %v32 = vld [vmem:[%s1 + $0x30] sm:$0xff]
  %v33 = vld [vmem:[%s1 + $0x38] sm:$0xff]
  %v34 = vld [vmem:[%s1 + $0x40] sm:$0xff]
  %v35 = vld [vmem:[%s1 + $0x48] sm:$0xff]
  %v36 = vld [vmem:[%s1 + $0x50] sm:$0xff]
  %v37 = vld [vmem:[%s1 + $0x58] sm:$0xff]
  %v38 = vld [vmem:[%s1 + $0x60] sm:$0xff]
  %v39 = vld [vmem:[%s1 + $0x68] sm:$0xff]
  %v40 = vld [vmem:[%s1 + $0x70] sm:$0xff]
  %v41 = vld [vmem:[%s1 + $0x78] sm:$0xff]
  %v42 = vld [vmem:[%s2 + $0x8] sm:$0xff]
  %v43 = vld [vmem:[%s2 + $0x10] sm:$0xff]
  %v44 = vld [vmem:[%s2 + $0x18] sm:$0xff]
  %v45 = vld [vmem:[%s2 + $0x20] sm:$0xff]
  %v46 = vld [vmem:[%s2 + $0x28] sm:$0xff]
  %v47 = vld [vmem:[%s2 + $0x30] sm:$0xff]
  %v48 = vld [vmem:[%s2 + $0x38] sm:$0xff]
  %v49 = vld [vmem:[%s2 + $0x40] sm:$0xff]
  %v50 = vld [vmem:[%s2 + $0x48] sm:$0xff]
  %v51 = vld [vmem:[%s2 + $0x50] sm:$0xff]
  %v52 = vld [vmem:[%s2 + $0x58] sm:$0xff]
  %v53 = vld [vmem:[%s2 + $0x60] sm:$0xff]
  %v54 = vld [vmem:[%s2 + $0x68] sm:$0xff]
  %v55 = vld [vmem:[%s2 + $0x70] sm:$0xff]
  %v56 = vld [vmem:[%s2 + $0x78] sm:$0xff]
  %v57 = vld [vmem:[%s2 + $0x80] sm:$0xff]
  %v58 = vld [vmem:[%s2 + $0x88] sm:$0xff]
  %v59 = vld [vmem:[%s2 + $0x90] sm:$0xff]
  %v60 = vld [vmem:[%s2 + $0x98] sm:$0xff]
  %v61 = vld [vmem:[%s2 + $0xa0] sm:$0xff]
  %vm62 = vcmask 261120
  %v64 = vsel %vm62, %v27, 0
  %v67 = vsel %vm62, %v29, 0
  %v70 = vsel %vm62, %v31, 0
  %v73 = vsel %vm62, %v33, 0
  %v76 = vsel %vm62, %v35, 0
  %v79 = vsel %vm62, %v37, 0
  %v82 = vsel %vm62, %v39, 0
  %v85 = vsel %vm62, %v41, 0
  %87 = vmatpush.msra.mxu0 %v57
  %88 = vmatpush.msra.mxu0 %v56
  %89 = vmatpush.msra.mxu0 %v55
  %90 = vmatpush.msra.mxu0 %v54
  %91 = vmatpush.msra.mxu0 %v53
  %92 = vmatpush.msra.mxu0 %v52
  %93 = vmatpush.msra.mxu0 %v51
  %94 = vmatpush.msra.mxu0 %v50
  %95 = vmatpush.msra.mxu0 %v49
  %96 = vmatpush.msra.mxu0 %v48
  %97 = vmatpush.msra.mxu0 %v47
  %98 = vmatpush.msra.mxu0 %v46
  %99 = vmatpush.msra.mxu0 %v45
  %100 = vmatpush.msra.mxu0 %v44
  %101 = vmatpush.msra.mxu0 %v43
  %102 = vmatpush.msra.mxu0 %v42
  %103 = vmatmul.f32.gmra.mxu0 %v26
  %v104 = vpop.f32.mrf.mxu0
  %v105 = vadd.f32 0.0, %v104
  %106 = vmatmul.f32.gmra.mxu0 %v28
  %v107 = vpop.f32.mrf.mxu0
  %v108 = vadd.f32 0.0, %v107
  %109 = vmatmul.f32.gmra.mxu0 %v30
  %v110 = vpop.f32.mrf.mxu0
  %v111 = vadd.f32 0.0, %v110
  %112 = vmatmul.f32.gmra.mxu0 %v32
  %v113 = vpop.f32.mrf.mxu0
  %v114 = vadd.f32 0.0, %v113
  %115 = vmatmul.f32.gmra.mxu0 %v34
  %v116 = vpop.f32.mrf.mxu0
  %v117 = vadd.f32 0.0, %v116
  %118 = vmatmul.f32.gmra.mxu0 %v36
  %v119 = vpop.f32.mrf.mxu0
  %v120 = vadd.f32 0.0, %v119
  %121 = vmatmul.f32.gmra.mxu0 %v38
  %v122 = vpop.f32.mrf.mxu0
  %v123 = vadd.f32 0.0, %v122
  %124 = vmatmul.f32.gmra.mxu0 %v40
  %v125 = vpop.f32.mrf.mxu0
  %v126 = vadd.f32 0.0, %v125
  %127 = vdwg.mxu0
  %128 = vmatpush.msra.mxu0 0.0
  %129 = vmatpush.msra.mxu0 0.0
  %130 = vmatpush.msra.mxu0 0.0
  %131 = vmatpush.msra.mxu0 0.0
  %132 = vmatpush.msra.mxu0 0.0
  %133 = vmatpush.msra.mxu0 0.0
  %134 = vmatpush.msra.mxu0 0.0
  %135 = vmatpush.msra.mxu0 0.0
  %136 = vmatpush.msra.mxu0 0.0
  %137 = vmatpush.msra.mxu0 0.0
  %138 = vmatpush.msra.mxu0 0.0
  %139 = vmatpush.msra.mxu0 0.0
  %140 = vmatpush.msra.mxu0 %v61
  %141 = vmatpush.msra.mxu0 %v60
  %142 = vmatpush.msra.mxu0 %v59
  %143 = vmatpush.msra.mxu0 %v58
  %144 = vmatmul.f32.gmra.mxu0 %v64
  %v145 = vpop.f32.mrf.mxu0
  %v146 = vadd.f32 %v105, %v145
  %147 = vmatmul.f32.gmra.mxu0 %v67
  %v148 = vpop.f32.mrf.mxu0
  %v149 = vadd.f32 %v108, %v148
  %150 = vmatmul.f32.gmra.mxu0 %v70
  %v151 = vpop.f32.mrf.mxu0
  %v152 = vadd.f32 %v111, %v151
  %153 = vmatmul.f32.gmra.mxu0 %v73
  %v154 = vpop.f32.mrf.mxu0
  %v155 = vadd.f32 %v114, %v154
  %156 = vmatmul.f32.gmra.mxu0 %v76
  %v157 = vpop.f32.mrf.mxu0
  %v158 = vadd.f32 %v117, %v157
  %159 = vmatmul.f32.gmra.mxu0 %v79
  %v160 = vpop.f32.mrf.mxu0
  %v161 = vadd.f32 %v120, %v160
  %162 = vmatmul.f32.gmra.mxu0 %v82
  %v163 = vpop.f32.mrf.mxu0
  %v164 = vadd.f32 %v123, %v163
  %165 = vmatmul.f32.gmra.mxu0 %v85
  %v166 = vpop.f32.mrf.mxu0
  %v167 = vadd.f32 %v126, %v166
  %168 = vdwg.mxu0
  %vm169 = vcmask 64512
  %v171 = vsel %vm169, %v17, 0
  %v174 = vsel %vm169, %v18, 0
  %v177 = vsel %vm169, %v19, 0
  %v180 = vsel %vm169, %v20, 0
  %v183 = vsel %vm169, %v21, 0
  %v186 = vsel %vm169, %v22, 0
  %v189 = vsel %vm169, %v23, 0
  %v192 = vsel %vm169, %v24, 0
  %194 = vmatpush.msra.mxu0 0.0
  %195 = vmatpush.msra.mxu0 0.0
  %196 = vmatpush.msra.mxu0 0.0
  %197 = vmatpush.msra.mxu0 0.0
  %198 = vmatpush.msra.mxu0 0.0
  %199 = vmatpush.msra.mxu0 0.0
  %200 = vmatpush.msra.mxu0 0.0
  %201 = vmatpush.msra.mxu0 0.0
  %202 = vmatpush.msra.mxu0 0.0
  %203 = vmatpush.msra.mxu0 0.0
  %204 = vmatpush.msra.mxu0 0.0
  %205 = vmatpush.msra.mxu0 0.0
  %206 = vmatpush.msra.mxu0 0.0
  %207 = vmatpush.msra.mxu0 0.0
  %208 = vmatpush.msra.mxu0 0.0
  %209 = vmatpush.msra.mxu0 %v25
  %210 = vmatmul.f32.gmra.mxu0 %v171
  %v211 = vpop.f32.mrf.mxu0
  %v212 = vadd.f32 %v146, %v211
  %213 = vmatmul.f32.gmra.mxu0 %v174
  %v214 = vpop.f32.mrf.mxu0
  %v215 = vadd.f32 %v149, %v214
  %216 = vmatmul.f32.gmra.mxu0 %v177
  %v217 = vpop.f32.mrf.mxu0
  %v218 = vadd.f32 %v152, %v217
  %219 = vmatmul.f32.gmra.mxu0 %v180
  %v220 = vpop.f32.mrf.mxu0
  %v221 = vadd.f32 %v155, %v220
  %222 = vmatmul.f32.gmra.mxu0 %v183
  %v223 = vpop.f32.mrf.mxu0
  %v224 = vadd.f32 %v158, %v223
  %225 = vmatmul.f32.gmra.mxu0 %v186
  %v226 = vpop.f32.mrf.mxu0
  %v227 = vadd.f32 %v161, %v226
  %228 = vmatmul.f32.gmra.mxu0 %v189
  %v229 = vpop.f32.mrf.mxu0
  %v230 = vadd.f32 %v164, %v229
  %231 = vmatmul.f32.gmra.mxu0 %v192
  %v232 = vpop.f32.mrf.mxu0
  %v233 = vadd.f32 %v167, %v232
  %234 = vdwg.mxu0
  %v235 = vld [vmem:[%s3] sm:$0x1]
  %v237 = vperm.slane %v235, 0
  %v239 = vadd.f32 %v212, %v237
  %v240 = vadd.f32 %v215, %v237
  %v241 = vadd.f32 %v218, %v237
  %v242 = vadd.f32 %v221, %v237
  %v243 = vadd.f32 %v224, %v237
  %v244 = vadd.f32 %v227, %v237
  %v245 = vadd.f32 %v230, %v237
  %v246 = vadd.f32 %v233, %v237
  %vm247 = vcmask 130048
  %248 = vst.msk [vmem:[%s4] sm:$0xff] %vm247, %v239
  %249 = vst.msk [vmem:[%s4 + $0x8] sm:$0xff] %vm247, %v240
  %250 = vst.msk [vmem:[%s4 + $0x10] sm:$0xff] %vm247, %v241
  %251 = vst.msk [vmem:[%s4 + $0x18] sm:$0xff] %vm247, %v242
  %252 = vst.msk [vmem:[%s4 + $0x20] sm:$0xff] %vm247, %v243
  %253 = vst.msk [vmem:[%s4 + $0x28] sm:$0xff] %vm247, %v244
  %254 = vst.msk [vmem:[%s4 + $0x30] sm:$0xff] %vm247, %v245
  %255 = vst.msk [vmem:[%s4 + $0x38] sm:$0xff] %vm247, %v246
  // Predicated region
  $region18: #{tpu_custom_call.1} parent=0 // pred_check
    _
  $region19: #{tpu_custom_call.1} parent=0 // pred_check_branch
    %257 = sbr.rel (0) target = $region21
  $region20: #{tpu_custom_call.1} parent=0 // pred_region
    _
  $region21: #{tpu_custom_call.1} parent=0 // pred_fallthru
    _
  // Predicated region
  $region22: #{tpu_custom_call.1} parent=0 // pred_check
    _
  $region23: #{tpu_custom_call.1} parent=0 // pred_check_branch
    %259 = sbr.rel (0) target = $region25
  $region24: #{tpu_custom_call.1} parent=0 // pred_region
    _
  $region25: #{tpu_custom_call.1} parent=0 // pred_fallthru
    _

</llo_original>
